<compile_context>
chip_gen: v7x
topology: tpu7x:2x2x1
jax: 0.10.0
libtpu: 0.0.40
codegen_flags: <defaults>
</compile_context>

<pallas_src>
import functools

import jax
import jax.numpy as jnp
from jax.experimental import pallas as pl
from jax.experimental.pallas import tpu as pltpu


def _round_up(x, m):
    return (x + m - 1) // m * m


def _vmem_info():
    """(working budget, capacity) in bytes; conservative 64 MiB fallback."""
    cap = 64 * 1024 * 1024
    try:
        info = pltpu.get_tpu_info()
        cap = int(getattr(info, "vmem_capacity_bytes", cap)) or cap
    except Exception:
        pass
    budget = max(16 * 1024 * 1024, cap - 16 * 1024 * 1024)
    return budget, cap


# ---------------------------------------------------------------------------
# GEMM kernels.
# ---------------------------------------------------------------------------
def _conv_gemm_fullk_kernel(x_ref, w_ref, b_ref, o_ref, *, apply_relu):
    # x_ref: (TM, K_pad) bf16   w_ref: (K_pad, TN) bf16 (resident across rows)
    # b_ref: (1, TN) f32        o_ref: (TM, TN) f32
    out = jnp.dot(x_ref[...], w_ref[...], preferred_element_type=jnp.float32)
    out = out + b_ref[...]
    if apply_relu:
        out = jnp.maximum(out, 0.0)
    o_ref[...] = out.astype(o_ref.dtype)


def _conv_gemm_ktiled_kernel(x_ref, w_ref, b_ref, o_ref, acc_ref, *,
                             apply_relu):
    # P3 accumulator pattern; K is the innermost grid axis.
    k = pl.program_id(2)

    @pl.when(k == 0)
    def _init():
        acc_ref[...] = jnp.zeros_like(acc_ref)

    acc_ref[...] += jnp.dot(x_ref[...], w_ref[...],
                            preferred_element_type=jnp.float32)

    @pl.when(k == pl.num_programs(2) - 1)
    def _finalize():
        out = acc_ref[...] + b_ref[...]
        if apply_relu:
            out = jnp.maximum(out, 0.0)
        o_ref[...] = out.astype(o_ref.dtype)


# ---------------------------------------------------------------------------
# im2col (K padding folded into the single write of the patch matrix).
# ---------------------------------------------------------------------------
def _im2col_padded(x, KH, KW, stride, padding, K_pad, dtype, data_format):
    """Window-gather -> (B*OH*OW, K_pad) patch matrix, (kh, kw, ic)-minor."""
    if data_format == "NCHW":
        B, IC, H, W = x.shape
        xh = jnp.transpose(x, (0, 2, 3, 1))
    elif data_format == "NHWC":
        B, H, W, IC = x.shape
        xh = x
    else:
        raise ValueError(data_format)
    xh = xh.astype(dtype)
    if padding > 0:
        xh = jnp.pad(xh,
                     ((0, 0), (padding, padding), (padding, padding), (0, 0)))
        H += 2 * padding
        W += 2 * padding
    OH = (H - KH) // stride + 1
    OW = (W - KW) // stride + 1
    cols = []
    for i in range(KH):
        for j in range(KW):
            cols.append(xh[:,
                           i:i + stride * (OH - 1) + 1:stride,
                           j:j + stride * (OW - 1) + 1:stride,
                           :])
    K = KH * KW * IC
    if K_pad > K:
        cols.append(jnp.zeros((B, OH, OW, K_pad - K), dtype))
    patches = jnp.concatenate(cols, axis=-1)   # single write, already K-padded
    return patches.reshape(B * OH * OW, K_pad), OH, OW


# ---------------------------------------------------------------------------
# Conv2d (+ bias, optional ReLU) as an MXU GEMM.
# ---------------------------------------------------------------------------
def conv2d_mxu(x, weight, bias, *, stride=1, padding=0, apply_relu=True,
               compute_dtype=jnp.bfloat16, data_format="NCHW",
               out_format="NCHW", force_k_tiling=False, _max_tk=None):
    """nn.Conv2d(stride, padding, bias=True) [+ ReLU] via Pallas on the MXU."""
    if data_format == "NCHW":
        B, IC, H, W = x.shape
    elif data_format == "NHWC":
        B, H, W, IC = x.shape
    else:
        raise ValueError(data_format)
    OC, IC_w, KH, KW = weight.shape
    assert IC == IC_w

    Hp, Wp = H + 2 * padding, W + 2 * padding
    OH = (Hp - KH) // stride + 1
    OW = (Wp - KW) // stride + 1
    rows = B * OH * OW
    K = KH * KW * IC

    K_pad = _round_up(K, 128)
    # 256-wide N tiles feed the full 2x256 MXU on v6e/v7x; 128 is fine on v5e.
    OC_pad = _round_up(OC, 256) if OC >= 192 else _round_up(OC, 128)
    TN = 256 if OC_pad % 256 == 0 else 128

    budget, cap = _vmem_info()
    fit_budget = int(0.8 * budget)
    isz = jnp.dtype(compute_dtype).itemsize
    row_cap = max(128, _round_up(rows, 128))

    # --- choose fast path (full-K resident weight, no K grid axis) ----------
    TM = None
    TK = None
    use_k_tiling = bool(force_k_tiling)
    if not use_k_tiling:
        for tm in (512, 256, 128):
            if tm > row_cap:
                continue
            foot = (2 * tm * K_pad * isz      # patch tile, double-buffered
                    + 2 * K_pad * TN * isz    # resident weight slab
                    + 2 * tm * TN * 4         # f32 output tile
                    + 2 * TN * 4)
            if foot <= fit_budget:
                TM = tm
                break
        if TM is None:
            use_k_tiling = True

    if use_k_tiling:
        tk_opts = [t for t in (1024, 512, 256, 128) if K_pad % t == 0]
        if _max_tk is not None:
            tk_opts = [t for t in tk_opts if t <= _max_tk] or [128]
        for tk in tk_opts:
            for tm in (512, 256, 128):
                if tm > row_cap:
                    continue
                foot = (2 * tm * tk * isz + 2 * tk * TN * isz
                        + tm * TN * 4 + 2 * tm * TN * 4 + 2 * TN * 4)
                if foot <= fit_budget:
                    TK, TM = tk, tm
                    break
            if TK is not None:
                break
        if TK is None:                        # best effort
            TK, TM = tk_opts[-1], 128
    else:
        # Single-block grid would leave the second v7x TensorCore idle: split
        # the row axis when the whole problem is otherwise one grid step.
        if OC_pad // TN == 1 and TM >= 256 and _round_up(rows, TM) // TM == 1:
            TM //= 2

    rows_pad = _round_up(rows, TM)

    # --- build padded operands ----------------------------------------------
    a, OH2, OW2 = _im2col_padded(x, KH, KW, stride, padding, K_pad,
                                 compute_dtype, data_format)
    assert (OH2, OW2) == (OH, OW)
    if rows_pad > rows:
        a = jnp.concatenate(
            [a, jnp.zeros((rows_pad - rows, K_pad), compute_dtype)], axis=0)

    # OIHW weight -> (kh, kw, ic)-minor (K, OC), matching the patch layout.
    w2d = jnp.transpose(weight, (2, 3, 1, 0)).reshape(K, OC).astype(compute_dtype)
    w2d = jnp.pad(w2d, ((0, K_pad - K), (0, OC_pad - OC)))
    b2d = jnp.pad(bias.astype(jnp.float32).reshape(1, OC),
                  ((0, 0), (0, OC_pad - OC)))

    if use_k_tiling:
        foot = (2 * TM * TK * isz + 2 * TK * TN * isz
                + TM * TN * 4 + 2 * TM * TN * 4 + 2 * TN * 4)
    else:
        foot = (2 * TM * K_pad * isz + 2 * K_pad * TN * isz
                + 2 * TM * TN * 4 + 2 * TN * 4)
    vmem_limit = int(min(cap - 8 * 1024 * 1024,
                         max(32 * 1024 * 1024, foot + 16 * 1024 * 1024)))

    cost = pl.CostEstimate(
        flops=2 * rows_pad * K_pad * OC_pad,
        transcendentals=0,
        bytes_accessed=int(rows_pad * K_pad * isz + K_pad * OC_pad * isz
                           + OC_pad * 4 + rows_pad * OC_pad * 4))

    if use_k_tiling:
        grid = (OC_pad // TN, rows_pad // TM, K_pad // TK)
        out2d = pl.pallas_call(
            functools.partial(_conv_gemm_ktiled_kernel, apply_relu=apply_relu),
            out_shape=jax.ShapeDtypeStruct((rows_pad, OC_pad), jnp.float32),
            grid=grid,
            in_specs=[
                pl.BlockSpec((TM, TK), lambda j, i, k: (i, k)),   # patch tile
                pl.BlockSpec((TK, TN), lambda j, i, k: (k, j)),   # weight tile
                pl.BlockSpec((1, TN), lambda j, i, k: (0, j)),    # bias tile
            ],
            out_specs=pl.BlockSpec((TM, TN), lambda j, i, k: (i, j)),
            scratch_shapes=[pltpu.VMEM((TM, TN), jnp.float32)],
            compiler_params=pltpu.CompilerParams(
                dimension_semantics=("parallel", "parallel", "arbitrary"),
                vmem_limit_bytes=vmem_limit),
            cost_estimate=cost,
        )(a, w2d, b2d)
    else:
        grid = (OC_pad // TN, rows_pad // TM)
        out2d = pl.pallas_call(
            functools.partial(_conv_gemm_fullk_kernel, apply_relu=apply_relu),
            out_shape=jax.ShapeDtypeStruct((rows_pad, OC_pad), jnp.float32),
            grid=grid,
            in_specs=[
                pl.BlockSpec((TM, K_pad), lambda j, i: (i, 0)),   # patch tile
                pl.BlockSpec((K_pad, TN), lambda j, i: (0, j)),   # resident W
                pl.BlockSpec((1, TN), lambda j, i: (0, j)),       # bias tile
            ],
            out_specs=pl.BlockSpec((TM, TN), lambda j, i: (i, j)),
            compiler_params=pltpu.CompilerParams(
                dimension_semantics=("parallel", "parallel"),
                vmem_limit_bytes=vmem_limit),
            cost_estimate=cost,
        )(a, w2d, b2d)

    out = out2d[:rows, :OC].reshape(B, OH, OW, OC)
    if out_format == "NCHW":
        out = jnp.transpose(out, (0, 3, 1, 2))    # match nn.Conv2d layout
    elif out_format != "NHWC":
        raise ValueError(out_format)
    return out


# ---------------------------------------------------------------------------
# non_linear_squashing as a lane-dense, row-batched Pallas kernel.
# ---------------------------------------------------------------------------
def _squash_kernel(u_ref, o_ref):
    u = u_ref[...]                                        # (TR, D_pad) f32
    ns = jnp.sum(u * u, axis=-1, keepdims=True)           # (TR, 1)
    scale = jnp.sqrt(ns) + 1e-10                          # EUP sqrt
    o_ref[...] = (u * (ns / ((1.0 + ns) * scale))).astype(o_ref.dtype)


def non_linear_squashing(u):
    """squash over the last axis of a (B, NC, D) capsule tensor."""
    B, NC, D = u.shape
    R = B * NC
    D_pad = _round_up(D, 128)               # lane-dense -> unmasked stores
    TR = 512 if R >= 512 else _round_up(R, 8)
    R_pad = _round_up(R, TR)
    u2 = u.reshape(R, D)
    if D_pad != D or R_pad != R:            # zero padding leaves norms intact
        u2 = jnp.pad(u2, ((0, R_pad - R), (0, D_pad - D)))
    out = pl.pallas_call(
        _squash_kernel,
        out_shape=jax.ShapeDtypeStruct((R_pad, D_pad), u.dtype),
        grid=(R_pad // TR,),
        in_specs=[pl.BlockSpec((TR, D_pad), lambda r: (r, 0))],
        out_specs=pl.BlockSpec((TR, D_pad), lambda r: (r, 0)),
        compiler_params=pltpu.CompilerParams(
            dimension_semantics=("parallel",)),
    )(u2)
    return out[:R, :D].reshape(B, NC, D)


# ---------------------------------------------------------------------------
# CapsConvLayer forward (the two conv branches).
# ---------------------------------------------------------------------------
def caps_conv_layer_conv_unit(x, weight, bias, *, stride=1, padding=0):
    """CapsConvLayer(is_convUnit=True): CapsConvUnit = Conv2d + ReLU (NCHW)."""
    # TODO(synk): conv_pre_model (an arbitrary user sub-network run before this
    # conv) has no Pallas equivalent here.
    return conv2d_mxu(x, weight, bias, stride=stride, padding=padding,
                      apply_relu=True, out_format="NCHW")


def caps_conv_layer_primary_caps(x, cap_weights, cap_biases, *, stride=1,
                                 padding=0):
    """CapsConvLayer(routing=False, is_convUnit=False): num_capsules conv
    units (nl_activation=False), stacked, flattened, squashed.  The per-capsule
    convs are fused into one conv so the GEMM output lane dim is dense."""
    NC, OC, IC, KH, KW = cap_weights.shape
    B = x.shape[0]
    w_fused = cap_weights.reshape(NC * OC, IC, KH, KW)
    b_fused = cap_biases.reshape(NC * OC)
    conv = conv2d_mxu(x, w_fused, b_fused, stride=stride, padding=padding,
                      apply_relu=False, out_format="NHWC")  # (B, OH, OW, NC*OC)
    _, OH, OW, _ = conv.shape
    # Reorder the NHWC GEMM output to PyTorch's (B, NC, OC*OH*OW) flatten order.
    u_i = conv.reshape(B, OH * OW, NC, OC)
    u_i = jnp.transpose(u_i, (0, 2, 3, 1)).reshape(B, NC, OC * OH * OW)
    return non_linear_squashing(u_i)
    # TODO(synk): routing=True (dynamic-routing iterations) not implemented.


if __name__ == "__main__":
    key = jax.random.PRNGKey(0)
    k1, k2, k3, k4, k5, k6 = jax.random.split(key, 6)

    # ---- branch 1: is_convUnit=True (Conv2d + ReLU) ------------------------
    B, IC1, H, W = 2, 1, 16, 16
    OC1, KS1, S1 = 32, 9, 1
    bnd1 = 1.0 / float(jnp.sqrt(IC1 * KS1 * KS1))
    x1 = jax.random.normal(k1, (B, IC1, H, W), dtype=jnp.float32)
    w1 = jax.random.uniform(k2, (OC1, IC1, KS1, KS1), dtype=jnp.float32,
                            minval=-bnd1, maxval=bnd1)
    b1 = jax.random.uniform(k3, (OC1,), dtype=jnp.float32,
                            minval=-bnd1, maxval=bnd1)

    out1 = caps_conv_layer_conv_unit(x1, w1, b1, stride=S1, padding=0)
    out1 = jax.block_until_ready(out1)

    # Reference with matching precision (bf16 inputs, f32 accumulation).
    ref1 = jax.lax.conv_general_dilated(
        x1.astype(jnp.bfloat16), w1.astype(jnp.bfloat16),
        window_strides=(S1, S1), padding="VALID",
        dimension_numbers=("NCHW", "OIHW", "NCHW"),
        preferred_element_type=jnp.float32)
    ref1 = jnp.maximum(ref1 + b1.reshape(1, OC1, 1, 1), 0.0)
    assert out1.shape == (B, OC1, 8, 8), out1.shape
    assert jnp.allclose(out1, ref1, atol=3e-3, rtol=3e-3), \
        float(jnp.max(jnp.abs(out1 - ref1)))

    # ---- branch 2: routing=False, is_convUnit=False (primary capsules) -----
    IC2, OC2, NC, KS2, S2 = 8, 8, 8, 5, 2
    bnd2 = 1.0 / float(jnp.sqrt(IC2 * KS2 * KS2))
    x2 = jax.random.normal(k4, (B, IC2, H, W), dtype=jnp.float32)
    w2 = jax.random.uniform(k5, (NC, OC2, IC2, KS2, KS2), dtype=jnp.float32,
                            minval=-bnd2, maxval=bnd2)
    b2 = jax.random.uniform(k6, (NC, OC2), dtype=jnp.float32,
                            minval=-bnd2, maxval=bnd2)

    out2 = caps_conv_layer_primary_caps(x2, w2, b2, stride=S2, padding=0)
    out2 = jax.block_until_ready(out2)

    # Reference: per-capsule conv (bf16 in, f32 acc), stack, flatten, squash.
    OHW2 = (H - KS2) // S2 + 1
    refs = []
    for i in range(NC):
        ci = jax.lax.conv_general_dilated(
            x2.astype(jnp.bfloat16), w2[i].astype(jnp.bfloat16),
            window_strides=(S2, S2), padding="VALID",
            dimension_numbers=("NCHW", "OIHW", "NCHW"),
            preferred_element_type=jnp.float32)
        refs.append(ci + b2[i].reshape(1, OC2, 1, 1))
    u_ref = jnp.stack(refs, axis=1).reshape(B, NC, -1)
    ns = jnp.sum(u_ref * u_ref, axis=-1, keepdims=True)
    ref2 = u_ref * (ns / (1.0 + ns)) / (jnp.sqrt(ns) + 1e-10)
    assert out2.shape == (B, NC, OC2 * OHW2 * OHW2), out2.shape
    assert jnp.allclose(out2, ref2, atol=3e-3, rtol=3e-3), \
        float(jnp.max(jnp.abs(out2 - ref2)))

    # ---- also exercise the K-tiled (P3 accumulator) fallback path ----------
    conv_kt = conv2d_mxu(x2, w2.reshape(NC * OC2, IC2, KS2, KS2),
                         b2.reshape(NC * OC2), stride=S2, padding=0,
                         apply_relu=False, out_format="NCHW",
                         force_k_tiling=True, _max_tk=128)
    conv_kt = jax.block_until_ready(conv_kt)
    conv_ref = jnp.concatenate(refs, axis=1)          # (B, NC*OC2, 6, 6)
    assert jnp.allclose(conv_kt, conv_ref, atol=3e-3, rtol=3e-3), \
        float(jnp.max(jnp.abs(conv_kt - conv_ref)))

    print("KERNEL_OK")
</pallas_src>

<mosaic_0001>
module attributes {stable_mosaic.version = 11 : i64} {
  func.func @_conv_gemm_fullk_kernel(%arg0: i32, %arg1: i32, %arg2: memref<128x128xbf16, #tpu.memory_space<vmem>>, %arg3: memref<128x128xbf16, #tpu.memory_space<vmem>>, %arg4: memref<1x128xf32, #tpu.memory_space<vmem>>, %arg5: memref<128x128xf32, #tpu.memory_space<vmem>>) attributes {dimension_semantics = [#tpu.dimension_semantics<parallel>, #tpu.dimension_semantics<parallel>], iteration_bounds = array<i64: 1, 1>, scalar_prefetch = 0 : i64, scratch_operands = 0 : i64, tpu.core_type = #tpu.core_type<tc>, window_params = [{transform_indices = @transform_0, window_bounds = array<i64: 128, 128>}, {transform_indices = @transform_1, window_bounds = array<i64: 128, 128>}, {transform_indices = @transform_2, window_bounds = array<i64: 1, 128>}, {transform_indices = @transform_3, window_bounds = array<i64: 128, 128>}]} {
    %c0 = arith.constant 0 : index
    %c0_0 = arith.constant 0 : index
    %0 = vector.load %arg2[%c0, %c0_0] : memref<128x128xbf16, #tpu.memory_space<vmem>>, vector<128x128xbf16>
    %c0_1 = arith.constant 0 : index
    %c0_2 = arith.constant 0 : index
    %1 = vector.load %arg3[%c0_1, %c0_2] : memref<128x128xbf16, #tpu.memory_space<vmem>>, vector<128x128xbf16>
    %cst = arith.constant dense<0.000000e+00> : vector<128x128xf32>
    %2 = tpu.matmul %0, %1, %cst {dimension_numbers = #tpu.dot_dimension_numbers<[1], [0], [0], [1], [0, 0, 1, 1], [], []>} : vector<128x128xbf16>, vector<128x128xbf16>, vector<128x128xf32> -> vector<128x128xf32>
    %c0_3 = arith.constant 0 : index
    %c0_4 = arith.constant 0 : index
    %3 = vector.load %arg4[%c0_3, %c0_4] : memref<1x128xf32, #tpu.memory_space<vmem>>, vector<1x128xf32>
    %4 = vector.broadcast %3 : vector<1x128xf32> to vector<128x128xf32>
    %5 = arith.addf %2, %4 : vector<128x128xf32>
    %cst_5 = arith.constant 0.000000e+00 : f32
    %6 = vector.broadcast %cst_5 : f32 to vector<128x128xf32>
    %7 = arith.maximumf %5, %6 : vector<128x128xf32>
    %c0_6 = arith.constant 0 : index
    %c0_7 = arith.constant 0 : index
    %8 = vector.load %arg5[%c0_6, %c0_7] : memref<128x128xf32, #tpu.memory_space<vmem>>, vector<128x128xf32>
    tpu.vector_store %arg5[%c0_6, %c0_7], %7 {strides = array<i32>} : memref<128x128xf32, #tpu.memory_space<vmem>>, vector<128x128xf32>,
    return
  }
  func.func @transform_0(%arg0: i32, %arg1: i32) -> (i32, i32) {
    %c0_i32 = arith.constant 0 : i32
    %c0_i32_0 = arith.constant 0 : i32
    return %arg1, %c0_i32 : i32, i32
  }
  func.func @transform_1(%arg0: i32, %arg1: i32) -> (i32, i32) {
    %c0_i32 = arith.constant 0 : i32
    %c0_i32_0 = arith.constant 0 : i32
    return %c0_i32, %arg0 : i32, i32
  }
  func.func @transform_2(%arg0: i32, %arg1: i32) -> (i32, i32) {
    %c0_i32 = arith.constant 0 : i32
    %c0_i32_0 = arith.constant 0 : i32
    return %c0_i32, %arg0 : i32, i32
  }
  func.func @transform_3(%arg0: i32, %arg1: i32) -> (i32, i32) {
    %c0_i32 = arith.constant 0 : i32
    return %arg1, %arg0 : i32, i32
  }
}

</mosaic_0001>

<llo_original>
// kernel: tpu_custom_call.1
$region0: #{tpu_custom_call.1}
  #allocation0 [shape = 'u32[]', space=smem, size = 0x4, offset = 0x4, fixed_abs, tag = 'smem constant byte address 0x4 - core index']
  #allocation1 [shape = 'u32[144,128]{1,0:T(1,128)}', space=vmem, size = 0x12000, scoped, tag = 'internal scratch']
  %s0 = inlined_call_operand.hbm [shape: bf16[128,128], index: 0, kind: input, shape index: {}]
  %s1 = inlined_call_operand.hbm [shape: bf16[128,128], index: 1, kind: input, shape index: {}]
  %s2 = inlined_call_operand.vmem [shape: f32[1,128], index: 2, kind: input, shape index: {}]
  %s3 = inlined_call_operand.hbm [shape: f32[128,128], index: 3, kind: output, shape index: {}]
  %s4 = sld [smem:[#allocation0]]
  $region30: #{tpu_custom_call.1} parent=0
    _
  %s6 = ssub.s32 1, %s4
  %s7 = scalar_select 0, %s6, %s4
  $region1: #{tpu_custom_call.1} parent=0
    #allocation2 [shape = 'u8[32768]{0}', space=vmem, size = 0x8000, scoped, tag = 'input window, operand 0, single buffered']
    #allocation3 [shape = 's32[1]{0}', space=sflag, size = 0x4, scoped, tag = 'scoped memory for tpu_custom_call.1']
    #allocation4 [shape = 's32[1]{0}', space=sflag, size = 0x4, scoped, tag = 'scoped memory for tpu_custom_call.1']
    #allocation5 [shape = 'u8[32768]{0}', space=vmem, size = 0x8000, scoped, tag = 'input window, operand 1, single buffered']
    #allocation6 [shape = 's32[1]{0}', space=sflag, size = 0x4, scoped, tag = 'scoped memory for tpu_custom_call.1']
    #allocation7 [shape = 'u8[65536]{0}', space=vmem, size = 0x10000, scoped, tag = 'output window, operand 0, single buffered']
    %8 = vsyncpa [#allocation3], 0
    %9 = vsyncpa [#allocation6], 0
    %10 = vsyncpa [#allocation4], 0
    // Predicated region
    $region2: #{tpu_custom_call.1} parent=1 // pred_check
      _
    $region3: #{tpu_custom_call.1} parent=1 // pred_check_branch
      %12 = sbr.rel (0) target = $region5
    $region4: #{tpu_custom_call.1} parent=1 // pred_region
      %s14 = ssub.s32 1024, 1024
      %15 = vsyncadd [#allocation3], %s14
      %s16 = sshll.u32 [#allocation2], 4
      %s17 = int_to_ptr.vmem [resolvable:$true] %s16
      %22 = dma.hbm_to_vmem [thread:$0]  %s0, 1024, %s17, [#allocation3], 64, 64, 4
    $region5: #{tpu_custom_call.1} parent=1 // pred_fallthru
      _
    // Predicated region
    $region6: #{tpu_custom_call.1} parent=1 // pred_check
      _
    $region7: #{tpu_custom_call.1} parent=1 // pred_check_branch
      %24 = sbr.rel (0) target = $region9
    $region8: #{tpu_custom_call.1} parent=1 // pred_region
      %s26 = ssub.s32 1024, 1024
      %27 = vsyncadd [#allocation6], %s26
      %s28 = sshll.u32 [#allocation5], 4
      %s29 = int_to_ptr.vmem [resolvable:$true] %s28
      %34 = dma.hbm_to_vmem [thread:$0]  %s1, 1024, %s29, [#allocation6], 64, 64, 4
    $region9: #{tpu_custom_call.1} parent=1 // pred_fallthru
      _
    // Predicated region
    $region10: #{tpu_custom_call.1} parent=1 // pred_check
      _
    $region11: #{tpu_custom_call.1} parent=1 // pred_check_branch
      %36 = sbr.rel (0) target = $region13
    $region12: #{tpu_custom_call.1} parent=1 // pred_region
      _
    $region13: #{tpu_custom_call.1} parent=1 // pred_fallthru
      _
    // Predicated region
    $region14: #{tpu_custom_call.1} parent=1 // pred_check
      _
    $region15: #{tpu_custom_call.1} parent=1 // pred_check_branch
      %38 = sbr.rel (0) target = $region17
    $region16: #{tpu_custom_call.1} parent=1 // pred_region
      %39 = dma.done [#allocation3], 1024
    $region17: #{tpu_custom_call.1} parent=1 // pred_fallthru
      _
    // Predicated region
    $region18: #{tpu_custom_call.1} parent=1 // pred_check
      _
    $region19: #{tpu_custom_call.1} parent=1 // pred_check_branch
      %41 = sbr.rel (0) target = $region21
    $region20: #{tpu_custom_call.1} parent=1 // pred_region
      %42 = dma.done [#allocation6], 1024
    $region21: #{tpu_custom_call.1} parent=1 // pred_fallthru
      _
    %v44 = vld [vmem:[#allocation2] sm:$0xf]
    %v45 = vld [vmem:[#allocation2 + $0x4] sm:$0xf]
    %v46 = vld [vmem:[#allocation2 + $0x8] sm:$0xf]
    %v47 = vld [vmem:[#allocation2 + $0xc] sm:$0xf]
    %v48 = vld [vmem:[#allocation2 + $0x10] sm:$0xf]
    %v49 = vld [vmem:[#allocation2 + $0x14] sm:$0xf]
    %v50 = vld [vmem:[#allocation2 + $0x18] sm:$0xf]
    %v51 = vld [vmem:[#allocation2 + $0x1c] sm:$0xf]
    %v52 = vld [vmem:[#allocation2 + $0x20] sm:$0xf]
    %v53 = vld [vmem:[#allocation2 + $0x24] sm:$0xf]
    %v54 = vld [vmem:[#allocation2 + $0x28] sm:$0xf]
    %v55 = vld [vmem:[#allocation2 + $0x2c] sm:$0xf]
    %v56 = vld [vmem:[#allocation2 + $0x30] sm:$0xf]
    %v57 = vld [vmem:[#allocation2 + $0x34] sm:$0xf]
    %v58 = vld [vmem:[#allocation2 + $0x38] sm:$0xf]
    %v59 = vld [vmem:[#allocation2 + $0x3c] sm:$0xf]
    %v60 = vld [vmem:[#allocation5] sm:$0xf]
    %v61 = vld [vmem:[#allocation5 + $0x4] sm:$0xf]
    %v62 = vld [vmem:[#allocation5 + $0x8] sm:$0xf]
    %v63 = vld [vmem:[#allocation5 + $0xc] sm:$0xf]
    %v64 = vld [vmem:[#allocation5 + $0x10] sm:$0xf]
    %v65 = vld [vmem:[#allocation5 + $0x14] sm:$0xf]
    %v66 = vld [vmem:[#allocation5 + $0x18] sm:$0xf]
    %v67 = vld [vmem:[#allocation5 + $0x1c] sm:$0xf]
    %v68 = vld [vmem:[#allocation5 + $0x20] sm:$0xf]
    %v69 = vld [vmem:[#allocation5 + $0x24] sm:$0xf]
    %v70 = vld [vmem:[#allocation5 + $0x28] sm:$0xf]
    %v71 = vld [vmem:[#allocation5 + $0x2c] sm:$0xf]
    %v72 = vld [vmem:[#allocation5 + $0x30] sm:$0xf]
    %v73 = vld [vmem:[#allocation5 + $0x34] sm:$0xf]
    %v74 = vld [vmem:[#allocation5 + $0x38] sm:$0xf]
    %v75 = vld [vmem:[#allocation5 + $0x3c] sm:$0xf]
    %v76 = vld [vmem:[%s2] sm:$0x1]
    %v78 = vlaneseq
    %v79 = vshrl.u32 %v78, 7
    %v80 = vsub.s32 0, %v79
    %v81 = vrot.slane %v76, %v80
    %v99 = vunpack.c.l.b16 %v44
    %v100 = vunpack.c.l.b16 %v45
    %v101 = vunpack.c.l.b16 %v46
    %v102 = vunpack.c.l.b16 %v47
    %v103 = vunpack.c.l.b16 %v48
    %v104 = vunpack.c.l.b16 %v49
    %v105 = vunpack.c.l.b16 %v50
    %v106 = vunpack.c.l.b16 %v51
    %v107 = vunpack.c.l.b16 %v52
    %v108 = vunpack.c.l.b16 %v53
    %v109 = vunpack.c.l.b16 %v54
    %v110 = vunpack.c.l.b16 %v55
    %v111 = vunpack.c.l.b16 %v56
    %v112 = vunpack.c.l.b16 %v57
    %v113 = vunpack.c.l.b16 %v58
    %v114 = vunpack.c.l.b16 %v59
    %v115 = vpack.c.b16 %v100, %v99
    %v116 = vpack.c.b16 %v102, %v101
    %v117 = vpack.c.b16 %v104, %v103
    %v118 = vpack.c.b16 %v106, %v105
    %v119 = vpack.c.b16 %v108, %v107
    %v120 = vpack.c.b16 %v110, %v109
    %v121 = vpack.c.b16 %v112, %v111
    %v122 = vpack.c.b16 %v114, %v113
    %v147 = vunpack.c.l.b16 %v60
    %v148 = vunpack.c.l.b16 %v61
    %v149 = vunpack.c.l.b16 %v62
    %v150 = vunpack.c.l.b16 %v63
    %v151 = vunpack.c.l.b16 %v64
    %v152 = vunpack.c.l.b16 %v65
    %v153 = vunpack.c.l.b16 %v66
    %v154 = vunpack.c.l.b16 %v67
    %v155 = vunpack.c.l.b16 %v68
    %v156 = vunpack.c.l.b16 %v69
    %v157 = vunpack.c.l.b16 %v70
    %v158 = vunpack.c.l.b16 %v71
    %v159 = vunpack.c.l.b16 %v72
    %v160 = vunpack.c.l.b16 %v73
    %v161 = vunpack.c.l.b16 %v74
    %v162 = vunpack.c.l.b16 %v75
    %v163 = vpack.c.b16 %v148, %v147
    %v164 = vpack.c.b16 %v150, %v149
    %v165 = vpack.c.b16 %v152, %v151
    %v166 = vpack.c.b16 %v154, %v153
    %v167 = vpack.c.b16 %v156, %v155
    %v168 = vpack.c.b16 %v158, %v157
    %v169 = vpack.c.b16 %v160, %v159
    %v170 = vpack.c.b16 %v162, %v161
    %179 = vmatprep.subr.bf16.mxu0 0
    %180 = vmatpush1.bf16.msra.mxu0 %v163
    %181 = vmatprep.subr.bf16.mxu0 0
    %182 = vmatpush1.bf16.msra.mxu0 %v164
    %183 = vmatprep.subr.bf16.mxu0 0
    %184 = vmatpush1.bf16.msra.mxu0 %v165
    %185 = vmatprep.subr.bf16.mxu0 0
    %186 = vmatpush1.bf16.msra.mxu0 %v166
    %187 = vmatprep.subr.bf16.mxu0 0
    %188 = vmatpush1.bf16.msra.mxu0 %v167
    %189 = vmatprep.subr.bf16.mxu0 0
    %190 = vmatpush1.bf16.msra.mxu0 %v168
    %191 = vmatprep.subr.bf16.mxu0 0
    %192 = vmatpush1.bf16.msra.mxu0 %v169
    %193 = vmatprep.subr.bf16.mxu0 0
    %194 = vmatpush1.bf16.msra.mxu0 %v170
    %195 = vmatprep.subr.bf16.mxu0 0
    %196 = vmatpush1.bf16.msra.mxu0 0
    %197 = vmatprep.subr.bf16.mxu0 0
    %198 = vmatpush1.bf16.msra.mxu0 0
    %199 = vmatprep.subr.bf16.mxu0 0
    %200 = vmatpush1.bf16.msra.mxu0 0
    %201 = vmatprep.subr.bf16.mxu0 0
    %202 = vmatpush1.bf16.msra.mxu0 0
    %203 = vmatprep.subr.bf16.mxu0 0
    %204 = vmatpush1.bf16.msra.mxu0 0
    %205 = vmatprep.subr.bf16.mxu0 0
    %206 = vmatpush1.bf16.msra.mxu0 0
    %207 = vmatprep.subr.bf16.mxu0 0
    %208 = vmatpush1.bf16.msra.mxu0 0
    %209 = vmatprep.subr.bf16.mxu0 0
    %210 = vmatpush1.bf16.msra.mxu0 0
    %211 = vmatprep.mubr.bf16.mxu0 0
    %212 = vmatmul.mubr.bf16.gmra.mrb[0].mxu0 %v115
    %v213 = vpop.f32.mrb[0].mxu0
    %v214 = vadd.f32 %v81, %v213
    %v215 = vpop.f32.mrb[0].mxu0
    %v216 = vpop.f32.mrb[0].mxu0
    %v217 = vadd.f32 %v81, %v216
    %v218 = vpop.f32.mrb[0].mxu0
    %219 = vmatprep.mubr.bf16.mxu0 0
    %220 = vmatmul.mubr.bf16.gmra.mrb[0].mxu0 %v116
    %v221 = vpop.f32.mrb[0].mxu0
    %v222 = vadd.f32 %v81, %v221
    %v223 = vpop.f32.mrb[0].mxu0
    %v224 = vpop.f32.mrb[0].mxu0
    %v225 = vadd.f32 %v81, %v224
    %v226 = vpop.f32.mrb[0].mxu0
    %227 = vmatprep.mubr.bf16.mxu0 0
    %228 = vmatmul.mubr.bf16.gmra.mrb[0].mxu0 %v117
    %v229 = vpop.f32.mrb[0].mxu0
    %v230 = vadd.f32 %v81, %v229
    %v231 = vpop.f32.mrb[0].mxu0
    %v232 = vpop.f32.mrb[0].mxu0
    %v233 = vadd.f32 %v81, %v232
    %v234 = vpop.f32.mrb[0].mxu0
    %235 = vmatprep.mubr.bf16.mxu0 0
    %236 = vmatmul.mubr.bf16.gmra.mrb[0].mxu0 %v118
    %v237 = vpop.f32.mrb[0].mxu0
    %v238 = vadd.f32 %v81, %v237
    %v239 = vpop.f32.mrb[0].mxu0
    %v240 = vpop.f32.mrb[0].mxu0
    %v241 = vadd.f32 %v81, %v240
    %v242 = vpop.f32.mrb[0].mxu0
    %243 = vmatprep.mubr.bf16.mxu0 0
    %244 = vmatmul.mubr.bf16.gmra.mrb[0].mxu0 %v119
    %v245 = vpop.f32.mrb[0].mxu0
    %v246 = vadd.f32 %v81, %v245
    %v247 = vpop.f32.mrb[0].mxu0
    %v248 = vpop.f32.mrb[0].mxu0
    %v249 = vadd.f32 %v81, %v248
    %v250 = vpop.f32.mrb[0].mxu0
    %251 = vmatprep.mubr.bf16.mxu0 0
    %252 = vmatmul.mubr.bf16.gmra.mrb[0].mxu0 %v120
    %v253 = vpop.f32.mrb[0].mxu0
    %v254 = vadd.f32 %v81, %v253
    %v255 = vpop.f32.mrb[0].mxu0
    %v256 = vpop.f32.mrb[0].mxu0
    %v257 = vadd.f32 %v81, %v256
    %v258 = vpop.f32.mrb[0].mxu0
    %259 = vmatprep.mubr.bf16.mxu0 0
    %260 = vmatmul.mubr.bf16.gmra.mrb[0].mxu0 %v121
    %v261 = vpop.f32.mrb[0].mxu0
    %v262 = vadd.f32 %v81, %v261
    %v263 = vpop.f32.mrb[0].mxu0
    %v264 = vpop.f32.mrb[0].mxu0
    %v265 = vadd.f32 %v81, %v264
    %v266 = vpop.f32.mrb[0].mxu0
    %267 = vmatprep.mubr.bf16.mxu0 0
    %268 = vmatmul.mubr.bf16.gmra.mrb[0].mxu0 %v122
    %v269 = vpop.f32.mrb[0].mxu0
    %v270 = vadd.f32 %v81, %v269
    %v271 = vpop.f32.mrb[0].mxu0
    %v272 = vpop.f32.mrb[0].mxu0
    %v273 = vadd.f32 %v81, %v272
    %v274 = vpop.f32.mrb[0].mxu0
    %275 = vdwg.mxu0
    %v276 = vmax.f32 %v214, 0.0
    %v277 = vmax.f32 %v217, 0.0
    %v278 = vmax.f32 %v222, 0.0
    %v279 = vmax.f32 %v225, 0.0
    %v280 = vmax.f32 %v230, 0.0
    %v281 = vmax.f32 %v233, 0.0
    %v282 = vmax.f32 %v238, 0.0
    %v283 = vmax.f32 %v241, 0.0
    %v284 = vmax.f32 %v246, 0.0
    %v285 = vmax.f32 %v249, 0.0
    %v286 = vmax.f32 %v254, 0.0
    %v287 = vmax.f32 %v257, 0.0
    %v288 = vmax.f32 %v262, 0.0
    %v289 = vmax.f32 %v265, 0.0
    %v290 = vmax.f32 %v270, 0.0
    %v291 = vmax.f32 %v273, 0.0
    %292 = vst [vmem:[#allocation7] sm:$0xff] %v276
    %293 = vst [vmem:[#allocation7 + $0x8] sm:$0xff] %v277
    %294 = vst [vmem:[#allocation7 + $0x10] sm:$0xff] %v278
    %295 = vst [vmem:[#allocation7 + $0x18] sm:$0xff] %v279
    %296 = vst [vmem:[#allocation7 + $0x20] sm:$0xff] %v280
    %297 = vst [vmem:[#allocation7 + $0x28] sm:$0xff] %v281
    %298 = vst [vmem:[#allocation7 + $0x30] sm:$0xff] %v282
    %299 = vst [vmem:[#allocation7 + $0x38] sm:$0xff] %v283
    %300 = vst [vmem:[#allocation7 + $0x40] sm:$0xff] %v284
    %301 = vst [vmem:[#allocation7 + $0x48] sm:$0xff] %v285
    %302 = vst [vmem:[#allocation7 + $0x50] sm:$0xff] %v286
    %303 = vst [vmem:[#allocation7 + $0x58] sm:$0xff] %v287
    %304 = vst [vmem:[#allocation7 + $0x60] sm:$0xff] %v288
    %305 = vst [vmem:[#allocation7 + $0x68] sm:$0xff] %v289
    %306 = vst [vmem:[#allocation7 + $0x70] sm:$0xff] %v290
    %307 = vst [vmem:[#allocation7 + $0x78] sm:$0xff] %v291
    // Predicated region
    $region22: #{tpu_custom_call.1} parent=1 // pred_check
      _
    $region23: #{tpu_custom_call.1} parent=1 // pred_check_branch
      %309 = sbr.rel (0) target = $region25
    $region24: #{tpu_custom_call.1} parent=1 // pred_region
      %s311 = ssub.s32 2048, 2048
      %312 = vsyncadd [#allocation4], %s311
      %s313 = sshll.u32 [#allocation7], 4
      %s314 = int_to_ptr.vmem [resolvable:$true] %s313
      %319 = dma.vmem_to_hbm [thread:$0]  %s314, 2048, %s3, [#allocation4], 128, 128, 8
    $region25: #{tpu_custom_call.1} parent=1 // pred_fallthru
      _
    // Predicated region
    $region26: #{tpu_custom_call.1} parent=1 // pred_check
      _
    $region27: #{tpu_custom_call.1} parent=1 // pred_check_branch
      %321 = sbr.rel (0) target = $region29
    $region28: #{tpu_custom_call.1} parent=1 // pred_region
      %322 = dma.done [#allocation4], 2048
    $region29: #{tpu_custom_call.1} parent=1 // pred_fallthru
      _
    %323 = vsyncpa [#allocation3], 1
    %324 = vsyncpa [#allocation6], 1
    %325 = vsyncpa [#allocation4], 1

</llo_original>
